<compile_context>
chip_gen: v7x
topology: tpu7x:2x2x1
jax: 0.10.0
libtpu: 0.0.40
codegen_flags: <defaults>
</compile_context>

<pallas_src>
import functools

import jax
import jax.numpy as jnp
import numpy as np
from jax.experimental import pallas as pl
from jax.experimental.pallas import tpu as pltpu


# ---------------------------------------------------------------------------
# Pallas kernel: pair-wise ranking loss + fused reduction (accumulated over a
# grid along the sampled-pair axis).
# ---------------------------------------------------------------------------
def _ranking_loss_kernel(packed_ref, out_ref, acc_ref, *, n, s_total, sigma,
                         alpha):
    step = pl.program_id(0)

    @pl.when(step == 0)
    def _():
        acc_ref[...] = jnp.zeros_like(acc_ref)

    p = packed_ref[...]                 # (6*n, TILE_S), rows: A,B,tA,tB,mA,mB
    ia = p[0 * n:1 * n, :]
    ib = p[1 * n:2 * n, :]
    ta = p[2 * n:3 * n, :]
    tb = p[3 * n:4 * n, :]
    ma = p[4 * n:5 * n, :]
    mb = p[5 * n:6 * n, :]

    hi = 1.0 + sigma
    lo = 1.0 / (1.0 + sigma)

    # target_ratio = ta / (tb + 1e-8); denom > 0 because targets > mask_value
    # (= -1e-8), so all threshold comparisons can be done divide-free.
    denom = tb + 1e-8
    ge_hi = ta >= hi * denom            # ratio >= 1 + sigma
    le_lo = ta <= lo * denom            # ratio <= 1 / (1 + sigma)

    mask_eq = jnp.logical_not(jnp.logical_or(ge_hi, le_lo))
    eq_f = mask_eq.astype(jnp.float32)
    labels = jnp.where(ge_hi, 1.0, jnp.where(le_lo, -1.0, 0.0))

    consistency_mask = ma * mb
    diff = ia - ib

    equal_loss = diff * diff * eq_f * consistency_mask

    # Stable softplus((ib - ia) * labels) = log(1 + exp((ib - ia) * labels)).
    x = -diff * labels
    softplus = jnp.maximum(x, 0.0) + jnp.log(1.0 + jnp.exp(-jnp.abs(x)))
    unequal_loss = softplus * (1.0 - eq_f) * consistency_mask

    # Fused reduction:
    #   sum_b [ alpha*mean_s(eq) + mean_s(uneq) ] / n
    # == sum_{b,s}(alpha*eq + uneq) / (S * n)
    acc_ref[...] += jnp.sum(alpha * equal_loss + unequal_loss, keepdims=True)

    @pl.when(step == pl.num_programs(0) - 1)
    def _():
        out_ref[...] = acc_ref[...] / float(s_total * n)


def _pairwise_ranking_loss(packed, *, n, s, sigma, alpha, tile_s=512):
    # One packed input: rows [ia; ib; ta; tb; ma; mb], pairs on the lane axis.
    tile_s = min(tile_s, s)
    if s % tile_s != 0:
        tile_s = s                      # fall back to a single block
    grid = (s // tile_s,)

    kernel = functools.partial(_ranking_loss_kernel, n=n, s_total=s,
                               sigma=sigma, alpha=alpha)
    out = pl.pallas_call(
        kernel,
        out_shape=jax.ShapeDtypeStruct((1, 1), jnp.float32),
        grid_spec=pltpu.PrefetchScalarGridSpec(
            num_scalar_prefetch=0,
            grid=grid,
            in_specs=[pl.BlockSpec((6 * n, tile_s), lambda si: (0, si))],
            out_specs=pl.BlockSpec((1, 1), lambda si: (0, 0)),
            scratch_shapes=[pltpu.VMEM((1, 1), jnp.float32)],
        ),
        compiler_params=pltpu.CompilerParams(
            dimension_semantics=("arbitrary",)),   # reduction axis
    )(packed)
    return out[0, 0]


# ---------------------------------------------------------------------------
# Glue: random pair sampling (mimics randomSampling with static shapes)
# ---------------------------------------------------------------------------
def _sample_pairs(key, inputs_flat, targets_flat, masks_flat, threshold,
                  sample_num):
    n, P = inputs_flat.shape
    keys = jax.random.split(key, n)

    def one(k, inp, tgt, msk):
        valid = tgt > threshold
        # Random ordering with all valid pixels first; equivalent to
        # masked_select + randperm when num_valid >= 2 * sample_num.
        # TODO(synk): dynamic-length masked_select (num_valid < 2*sample_num
        # and the odd-length trim branch) has no static-shape equivalent.
        rand = jax.random.uniform(k, (P,), dtype=jnp.float32)
        order = jnp.argsort(jnp.where(valid, rand, 2.0 + rand))
        idx_a = order[0:2 * sample_num:2]
        idx_b = order[1:2 * sample_num:2]
        return (inp[idx_a], inp[idx_b],
                tgt[idx_a], tgt[idx_b],
                msk[idx_a], msk[idx_b])

    return jax.vmap(one)(keys, inputs_flat, targets_flat, masks_flat)


# ---------------------------------------------------------------------------
# Full module forward
# ---------------------------------------------------------------------------
def ranking_loss_xian(inputs, targets, key, masks=None, *, point_pairs=128,
                      sigma=0.03, alpha=1.0, mask_value=-1e-8, tile_s=512):
    n, c, h, w = targets.shape
    if masks is None:
        masks = targets > mask_value

    inputs_f = inputs.reshape(n, -1).astype(jnp.float32)
    targets_f = targets.reshape(n, -1).astype(jnp.float32)
    masks_f = masks.reshape(n, -1).astype(jnp.float32)

    ia, ib, ta, tb, ma, mb = _sample_pairs(
        key, inputs_f, targets_f, masks_f, mask_value, point_pairs)

    # Pack the six (n, S) operands into one (6n, S) slab -> single DMA.
    # TODO(synk): a further step would scalar-prefetch idx_a/idx_b and do the
    # gather inside the kernel (argsort itself has no Pallas equivalent).
    packed = jnp.concatenate([ia, ib, ta, tb, ma, mb], axis=0)

    return _pairwise_ranking_loss(packed, n=n, s=point_pairs,
                                  sigma=sigma, alpha=alpha, tile_s=tile_s)


# Pure-JAX reference of the pair-loss math (spec-faithful, for sanity check).
def _ref_pair_loss(ia, ib, ta, tb, ma, mb, sigma, alpha):
    ratio = ta / (tb + 1e-8)
    hi, lo = 1.0 + sigma, 1.0 / (1.0 + sigma)
    mask_eq = (ratio < hi) & (ratio > lo)
    labels = jnp.where(ratio >= hi, 1.0, jnp.where(ratio <= lo, -1.0, 0.0))
    cm = ma * mb
    eq = (ia - ib) ** 2 * mask_eq.astype(jnp.float32) * cm
    uneq = (jnp.log(1.0 + jnp.exp((-ia + ib) * labels))
            * (1.0 - mask_eq.astype(jnp.float32)) * cm)
    per = alpha * eq.mean(axis=1) + uneq.mean(axis=1)
    return per.sum() / ia.shape[0]


if __name__ == "__main__":
    # Small shapes: batch=2, channels=4, spatial=16x16; 256 sampled pairs,
    # tile_s=128 so the grid/accumulator path (2 steps) is exercised.
    n, c, h, w = 2, 4, 16, 16
    point_pairs = 256
    tile_s = 128
    sigma, alpha, mask_value = 0.03, 1.0, -1e-8

    key = jax.random.PRNGKey(0)
    k_in, k_tgt, k_samp = jax.random.split(key, 3)

    inputs = jax.random.normal(k_in, (n, c, h, w), dtype=jnp.float32)
    # strictly positive targets -> every pixel valid (matches assumption above)
    targets = jax.random.uniform(k_tgt, (n, c, h, w), dtype=jnp.float32,
                                 minval=0.1, maxval=1.0)

    loss = ranking_loss_xian(inputs, targets, k_samp,
                             point_pairs=point_pairs, sigma=sigma,
                             alpha=alpha, mask_value=mask_value,
                             tile_s=tile_s)
    loss = jax.block_until_ready(loss)

    # Sanity check of the kernel math against a pure-JAX reference using the
    # same sampled pairs.
    masks = targets > mask_value
    ia, ib, ta, tb, ma, mb = _sample_pairs(
        k_samp,
        inputs.reshape(n, -1).astype(jnp.float32),
        targets.reshape(n, -1).astype(jnp.float32),
        masks.reshape(n, -1).astype(jnp.float32),
        mask_value, point_pairs)
    ref = _ref_pair_loss(ia, ib, ta, tb, ma, mb, sigma, alpha)

    np.testing.assert_allclose(np.asarray(loss), np.asarray(ref),
                               rtol=1e-5, atol=1e-6)
    print("KERNEL_OK")
</pallas_src>

<mosaic_0001>
module attributes {stable_mosaic.version = 11 : i64} {
  func.func @_ranking_loss_kernel(%arg0: i32, %arg1: memref<12x128xf32, #tpu.memory_space<vmem>>, %arg2: memref<1x1xf32, #tpu.memory_space<vmem>>, %arg3: memref<1x1xf32, #tpu.memory_space<vmem>>) attributes {dimension_semantics = [#tpu.dimension_semantics<arbitrary>], iteration_bounds = array<i64: 2>, scalar_prefetch = 0 : i64, scratch_operands = 1 : i64, tpu.core_type = #tpu.core_type<tc>, window_params = [{transform_indices = @transform_0, window_bounds = array<i64: 12, 128>}, {pipeline_mode = #tpu.pipeline_mode<synchronous>, transform_indices = @transform_1, window_bounds = array<i64: 1, 1>}]} {
    %c0_i32 = arith.constant 0 : i32
    %0 = arith.cmpi eq, %arg0, %c0_i32 : i32
    %1 = arith.extui %0 : i1 to i32
    %c0_i32_0 = arith.constant 0 : i32
    %2 = arith.cmpi ne, %1, %c0_i32_0 : i32
    scf.if %2 {
      %cst_20 = arith.constant 0.000000e+00 : f32
      %63 = vector.broadcast %cst_20 : f32 to vector<1x1xf32>
      %c0_21 = arith.constant 0 : index
      %c0_22 = arith.constant 0 : index
      %64 = vector.load %arg3[%c0_21, %c0_22] : memref<1x1xf32, #tpu.memory_space<vmem>>, vector<1x1xf32>
      tpu.vector_store %arg3[%c0_21, %c0_22], %63 {strides = array<i32>} : memref<1x1xf32, #tpu.memory_space<vmem>>, vector<1x1xf32>,
    } else {
    }
    %c0 = arith.constant 0 : index
    %c0_1 = arith.constant 0 : index
    %3 = vector.load %arg1[%c0, %c0_1] : memref<12x128xf32, #tpu.memory_space<vmem>>, vector<12x128xf32>
    %4 = vector.extract_strided_slice %3 {offsets = [0, 0], sizes = [2, 128], strides = [1, 1]} : vector<12x128xf32> to vector<2x128xf32>
    %5 = vector.extract_strided_slice %3 {offsets = [2, 0], sizes = [2, 128], strides = [1, 1]} : vector<12x128xf32> to vector<2x128xf32>
    %6 = vector.extract_strided_slice %3 {offsets = [4, 0], sizes = [2, 128], strides = [1, 1]} : vector<12x128xf32> to vector<2x128xf32>
    %7 = vector.extract_strided_slice %3 {offsets = [6, 0], sizes = [2, 128], strides = [1, 1]} : vector<12x128xf32> to vector<2x128xf32>
    %8 = vector.extract_strided_slice %3 {offsets = [8, 0], sizes = [2, 128], strides = [1, 1]} : vector<12x128xf32> to vector<2x128xf32>
    %9 = vector.extract_strided_slice %3 {offsets = [10, 0], sizes = [2, 128], strides = [1, 1]} : vector<12x128xf32> to vector<2x128xf32>
    %cst = arith.constant 9.99999993E-9 : f32
    %10 = vector.broadcast %cst : f32 to vector<2x128xf32>
    %11 = arith.addf %7, %10 : vector<2x128xf32>
    %cst_2 = arith.constant 1.030000e+00 : f32
    %12 = vector.broadcast %cst_2 : f32 to vector<2x128xf32>
    %13 = arith.mulf %12, %11 : vector<2x128xf32>
    %14 = arith.cmpf oge, %6, %13 : vector<2x128xf32>
    %cst_3 = arith.constant 0.970873773 : f32
    %15 = vector.broadcast %cst_3 : f32 to vector<2x128xf32>
    %16 = arith.mulf %15, %11 : vector<2x128xf32>
    %17 = arith.cmpf ole, %6, %16 : vector<2x128xf32>
    %18 = arith.ori %14, %17 : vector<2x128xi1>
    %cst_4 = arith.constant dense<true> : vector<2x128xi1>
    %19 = arith.xori %18, %cst_4 : vector<2x128xi1>
    %20 = arith.extui %19 : vector<2x128xi1> to vector<2x128xi32>
    %21 = arith.sitofp %20 : vector<2x128xi32> to vector<2x128xf32>
    %cst_5 = arith.constant -1.000000e+00 : f32
    %cst_6 = arith.constant 0.000000e+00 : f32
    %22 = vector.broadcast %cst_5 : f32 to vector<2x128xf32>
    %23 = vector.broadcast %cst_6 : f32 to vector<2x128xf32>
    %24 = arith.select %17, %22, %23 : vector<2x128xi1>, vector<2x128xf32>
    %cst_7 = arith.constant 1.000000e+00 : f32
    %25 = vector.broadcast %cst_7 : f32 to vector<2x128xf32>
    %26 = arith.select %14, %25, %24 : vector<2x128xi1>, vector<2x128xf32>
    %27 = arith.mulf %8, %9 : vector<2x128xf32>
    %28 = arith.subf %4, %5 : vector<2x128xf32>
    %29 = arith.mulf %28, %28 : vector<2x128xf32>
    %30 = arith.mulf %29, %21 : vector<2x128xf32>
    %31 = arith.mulf %30, %27 : vector<2x128xf32>
    %cst_8 = arith.constant 0.000000e+00 : f32
    %32 = vector.broadcast %cst_8 : f32 to vector<2x128xf32>
    %33 = arith.subf %32, %28 : vector<2x128xf32>
    %34 = arith.mulf %33, %26 : vector<2x128xf32>
    %cst_9 = arith.constant 0.000000e+00 : f32
    %35 = vector.broadcast %cst_9 : f32 to vector<2x128xf32>
    %36 = arith.maximumf %34, %35 : vector<2x128xf32>
    %37 = math.absf %34 : vector<2x128xf32>
    %cst_10 = arith.constant 0.000000e+00 : f32
    %38 = vector.broadcast %cst_10 : f32 to vector<2x128xf32>
    %39 = arith.subf %38, %37 : vector<2x128xf32>
    %40 = math.exp %39 : vector<2x128xf32>
    %cst_11 = arith.constant 1.000000e+00 : f32
    %41 = vector.broadcast %cst_11 : f32 to vector<2x128xf32>
    %42 = arith.addf %41, %40 : vector<2x128xf32>
    %43 = math.log %42 : vector<2x128xf32>
    %44 = arith.addf %36, %43 : vector<2x128xf32>
    %cst_12 = arith.constant 1.000000e+00 : f32
    %45 = vector.broadcast %cst_12 : f32 to vector<2x128xf32>
    %46 = arith.subf %45, %21 : vector<2x128xf32>
    %47 = arith.mulf %44, %46 : vector<2x128xf32>
    %48 = arith.mulf %47, %27 : vector<2x128xf32>
    %c0_13 = arith.constant 0 : index
    %c0_14 = arith.constant 0 : index
    %49 = vector.load %arg3[%c0_13, %c0_14] : memref<1x1xf32, #tpu.memory_space<vmem>>, vector<1x1xf32>
    %cst_15 = arith.constant 1.000000e+00 : f32
    %50 = vector.broadcast %cst_15 : f32 to vector<2x128xf32>
    %51 = arith.mulf %50, %31 : vector<2x128xf32>
    %52 = arith.addf %51, %48 : vector<2x128xf32>
    %53 = vector.shape_cast %52 : vector<2x128xf32> to vector<1x2x128xf32>
    %cst_16 = arith.constant dense<0.000000e+00> : vector<1xf32>
    %54 = vector.multi_reduction <add>, %53, %cst_16 [1, 2] : vector<1x2x128xf32> to vector<1xf32>
    %55 = vector.shape_cast %54 : vector<1xf32> to vector<1x1x1xf32>
    %56 = vector.extract %55[0, 0, 0] : f32 from vector<1x1x1xf32>
    %57 = vector.broadcast %56 : f32 to vector<1x1xf32>
    %58 = arith.addf %49, %57 : vector<1x1xf32>
    %c0_17 = arith.constant 0 : index
    %c0_18 = arith.constant 0 : index
    %59 = vector.load %arg3[%c0_17, %c0_18] : memref<1x1xf32, #tpu.memory_space<vmem>>, vector<1x1xf32>
    tpu.vector_store %arg3[%c0_17, %c0_18], %58 {strides = array<i32>} : memref<1x1xf32, #tpu.memory_space<vmem>>, vector<1x1xf32>,
    %c1_i32 = arith.constant 1 : i32
    %60 = arith.cmpi eq, %arg0, %c1_i32 : i32
    %61 = arith.extui %60 : i1 to i32
    %c0_i32_19 = arith.constant 0 : i32
    %62 = arith.cmpi ne, %61, %c0_i32_19 : i32
    scf.if %62 {
      %c0_20 = arith.constant 0 : index
      %c0_21 = arith.constant 0 : index
      %63 = vector.load %arg3[%c0_20, %c0_21] : memref<1x1xf32, #tpu.memory_space<vmem>>, vector<1x1xf32>
      %cst_22 = arith.constant 5.120000e+02 : f32
      %64 = vector.broadcast %cst_22 : f32 to vector<1x1xf32>
      %65 = arith.divf %63, %64 : vector<1x1xf32>
      %c0_23 = arith.constant 0 : index
      %c0_24 = arith.constant 0 : index
      %66 = vector.load %arg2[%c0_23, %c0_24] : memref<1x1xf32, #tpu.memory_space<vmem>>, vector<1x1xf32>
      tpu.vector_store %arg2[%c0_23, %c0_24], %65 {strides = array<i32>} : memref<1x1xf32, #tpu.memory_space<vmem>>, vector<1x1xf32>,
    } else {
    }
    return
  }
  func.func @transform_0(%arg0: i32) -> (i32, i32) {
    %c0_i32 = arith.constant 0 : i32
    %c0_i32_0 = arith.constant 0 : i32
    return %c0_i32, %arg0 : i32, i32
  }
  func.func @transform_1(%arg0: i32) -> (i32, i32) {
    %c0_i32 = arith.constant 0 : i32
    %c0_i32_0 = arith.constant 0 : i32
    %c0_i32_1 = arith.constant 0 : i32
    return %c0_i32, %c0_i32_0 : i32, i32
  }
}

</mosaic_0001>

<llo_original>
// kernel: tpu_custom_call.1
$region0: #{tpu_custom_call.1}
  #allocation0 [shape = 'u32[]', space=smem, size = 0x4, offset = 0x4, fixed_abs, tag = 'smem constant byte address 0x4 - core index']
  #allocation1 [shape = 'u32[144,128]{1,0:T(1,128)}', space=vmem, size = 0x12000, scoped, tag = 'internal scratch']
  #allocation2 [shape = 'f32[1,1]{1,0:T(1,128)}', space=vmem, size = 0x200, scoped, tag = 'scratch operand']
  %s0 = inlined_call_operand.hbm [shape: f32[12,256], index: 0, kind: input, shape index: {}]
  %s1 = inlined_call_operand.hbm [shape: f32[1,1], index: 1, kind: output, shape index: {}]
  %s2 = sld [smem:[#allocation0]]
  $region49: #{tpu_custom_call.1} parent=0
    _
  %s4 = ssub.s32 1, %s2
  %s5 = scalar_select 0, %s4, %s2
  $region1: #{tpu_custom_call.1} parent=0
    #allocation3 [shape = 'u8[16384]{0}', space=vmem, size = 0x4000, scoped, tag = 'input window, operand 0']
    #allocation4 [shape = 's32[2]{0}', space=sflag, size = 0x8, scoped, tag = 'scoped memory for tpu_custom_call.1']
    #allocation5 [shape = 's32[2]{0}', space=sflag, size = 0x8, scoped, tag = 'scoped memory for tpu_custom_call.1']
    #allocation6 [shape = 'u8[512]{0}', space=vmem, size = 0x400, scoped, tag = 'output window, operand 0, single buffered']
    %6 = vsyncpa [#allocation4], 0
    %s7 = scalar_lea.sflag [#allocation4], 1
    %8 = vsyncpa %s7, 0
    %9 = vsyncpa [#allocation5], 0
    loop: start=0, step=1, limit=4
    $region2: #{tpu_custom_call.1} parent=1 // loop_pre_header
      _
    $region3: #{tpu_custom_call.1} parent=1 // loop_header
      %s11 = sphi 0, %s15
      %p12 = scmp.ge.s32.totalorder %s11, 4
      %s21 = sphi 0, %s23
      %s24 = sphi 0, %s21
      %s25 = sphi 0, %s24
      %s41 = sphi 0, %s25
      %s45 = sphi 0, %s45
      %s47 = sphi 0, %s45
      %s48 = sphi 0, %s47
      %s62 = sphi 0, %s48
    $region4: #{tpu_custom_call.1} parent=1 // loop_header_branch
      %14 = sbr.rel (%p12) target = $region8
    $region5: #{tpu_custom_call.1} parent=1 // loop_body
      %s16 = ssub.s32 %s11, 1
      %s17 = ssub.s32 %s11, 2
      %s18 = sadd.s32 %s11, 1
      %s19 = ssub.s32 %s11, %s18
      %p20 = scmp.eq.s32.totalorder %s19, 0
      %s22 = sadd.s32 %s21, 1
      %s23 = scalar_select %p20, %s21, %s22
      %p26 = pneg %p20
      %p27 = scmp.eq.s32.totalorder %s11, 1
      %p28 = por %p26, %p27
      %p29 = scmp.ne.s32.totalorder %s21, %s24
      %p30 = scmp.eq.s32.totalorder %s11, 0
      %p31 = por %p29, %p30
      %p32 = scmp.ne.s32.totalorder %s21, %s24
      %p33 = scmp.eq.s32.totalorder %s16, 1
      %p34 = por %p32, %p33
      %p35 = scmp.ne.s32.totalorder %s24, %s25
      %p36 = scmp.eq.s32.totalorder %s16, 0
      %p37 = por %p35, %p36
      %p38 = scmp.ne.s32.totalorder %s24, %s25
      %p39 = scmp.eq.s32.totalorder %s17, 1
      %p40 = por %p38, %p39
      %p42 = scmp.ne.s32.totalorder %s25, %s41
      %p43 = scmp.eq.s32.totalorder %s17, 0
      %p44 = por %p42, %p43
      %s46 = sadd.s32 %s45, 1
      %p49 = scmp.eq.s32.totalorder %s11, 1
      %p50 = scmp.ne.s32.totalorder %s45, %s47
      %p51 = scmp.eq.s32.totalorder %s11, 0
      %p52 = por %p50, %p51
      %p53 = scmp.ne.s32.totalorder %s45, %s47
      %p54 = scmp.eq.s32.totalorder %s16, 1
      %p55 = por %p53, %p54
      %p56 = scmp.ne.s32.totalorder %s47, %s48
      %p57 = scmp.eq.s32.totalorder %s16, 0
      %p58 = por %p56, %p57
      %p59 = scmp.ne.s32.totalorder %s47, %s48
      %p60 = scmp.eq.s32.totalorder %s17, 1
      %p61 = por %p59, %p60
      %p63 = scmp.ne.s32.totalorder %s48, %s62
      %p64 = scmp.eq.s32.totalorder %s17, 0
      %p65 = por %p63, %p64
      %p66 = scmp.le.s32.totalorder 1, %s11
      %p67 = scmp.lt.s32.totalorder %s11, 3
      %p68 = pnand %p66, %p67
      %p69 = pneg %p68
      // Predicated region
      $region9: #{tpu_custom_call.1} parent=5 // pred_check
        _
      $region10: #{tpu_custom_call.1} parent=5 // pred_check_branch
        %71 = sbr.rel (%p68) target = $region12
      $region11: #{tpu_custom_call.1} parent=5 // pred_region
        %s72 = ssub.s32 %s11, 1
      $region12: #{tpu_custom_call.1} parent=5 // pred_fallthru
        _
      %p73 = scmp.lt.s32.totalorder %s11, 2
      // Predicated region
      $region13: #{tpu_custom_call.1} parent=5 // pred_check
        %p74 = pneg %p73
      $region14: #{tpu_custom_call.1} parent=5 // pred_check_branch
        %76 = sbr.rel (%p74) target = $region16
      $region15: #{tpu_custom_call.1} parent=5 // pred_region
        // Predicated region
        $region17: #{tpu_custom_call.1} parent=15 // pred_check
          %p77 = pneg %p31
        $region18: #{tpu_custom_call.1} parent=15 // pred_check_branch
          %79 = sbr.rel (%p77) target = $region20
        $region19: #{tpu_custom_call.1} parent=15 // pred_region
          %s80 = sand.u32 %s21, 1
          %s81 = scalar_lea.sflag [#allocation4], %s80
          %s82 = sand.u32 %s21, 1
          %s83 = smul.addr %s82, 16
          %s84 = scalar_lea.vmem [#allocation3], %s83
          %s86 = ssub.s32 256, 256
          %87 = vsyncadd %s81, %s86
          %s88 = smul.addr %s11, 128
          %s89 = scalar_lea.hbm %s0, %s88
          %s90 = sshll.u32 %s84, 4
          %s91 = int_to_ptr.vmem [resolvable:$true] %s90
          %96 = dma.hbm_to_vmem [thread:$0]  %s89, 256, %s91, %s81, 256, 128, 8
        $region20: #{tpu_custom_call.1} parent=15 // pred_fallthru
          _
      $region16: #{tpu_custom_call.1} parent=5 // pred_fallthru
        _
      %p97 = scmp.le.s32.totalorder 1, %s11
      %p98 = scmp.lt.s32.totalorder %s11, 3
      %p99 = pnand %p97, %p98
      %p100 = pneg %p99
      // Predicated region
      $region21: #{tpu_custom_call.1} parent=5 // pred_check
        _
      $region22: #{tpu_custom_call.1} parent=5 // pred_check_branch
        %102 = sbr.rel (%p99) target = $region24
      $region23: #{tpu_custom_call.1} parent=5 // pred_region
        %s103 = ssub.s32 %s11, 1
        %s104 = sand.u32 %s24, 1
        %s105 = scalar_lea.sflag [#allocation4], %s104
        %s106 = sand.u32 %s24, 1
        %s107 = smul.addr %s106, 16
        %s108 = scalar_lea.vmem [#allocation3], %s107
        // Predicated region
        $region25: #{tpu_custom_call.1} parent=23 // pred_check
          %p109 = pneg %p37
        $region26: #{tpu_custom_call.1} parent=23 // pred_check_branch
          %111 = sbr.rel (%p109) target = $region28
        $region27: #{tpu_custom_call.1} parent=23 // pred_region
          %112 = dma.done %s105, 256
        $region28: #{tpu_custom_call.1} parent=23 // pred_fallthru
          _
        %s113 = sand.u32 %s24, 1
        %s114 = scalar_lea.sflag [#allocation4], %s113
        %s115 = sand.u32 %s24, 1
        %s116 = smul.addr %s115, 16
        %s117 = scalar_lea.vmem [#allocation3], %s116
        %p118 = pneg %p37
        %p119 = pneg %p34
        %p120 = pneg %p58
        %p121 = pneg %p55
        %p122 = scmp.eq.s32.totalorder %s16, 0
        // Predicated region
        $region29: #{tpu_custom_call.1} parent=23 // pred_check
          %p123 = pneg %p122
        $region30: #{tpu_custom_call.1} parent=23 // pred_check_branch
          %125 = sbr.rel (%p123) target = $region32
        $region31: #{tpu_custom_call.1} parent=23 // pred_region
          %vm126 = vcmask 0
          %127 = vst.msk [vmem:[#allocation2] sm:$0x1] %vm126, 0.0
        $region32: #{tpu_custom_call.1} parent=23 // pred_fallthru
          _
        %v128 = vld [vmem:[%s108] sm:$0xff]
        %v129 = vld [vmem:[%s108 + $0x8] sm:$0xf]
        %v130 = vadd.f32 %v128, 1e-08
        %v131 = vmul.f32 %v130, 1.03
        %v133 = vrot.slane %v131, 2
        %vm135 = vcmp.ge.f32.partialorder %v128, %v133
        %v136 = vmul.f32 %v130, 0.9708738
        %v138 = vrot.slane %v136, 2
        %vm140 = vcmp.le.f32.partialorder %v128, %v138
        %vm141 = vmor %vm135, %vm140
        %vm142 = vmxor %vm141, 1
        %v143 = vsel %vm142, 1, 0
        %v144 = vcvt.s32.f32 %v143
        %v145 = vsel %vm140, -1.0, 0.0
        %v146 = vsel %vm135, 1.0, %v145
        %v148 = vrot.slane %v129, 2
        %v150 = vmul.f32 %v129, %v148
        %v152 = vrot.slane %v128, 2
        %v154 = vsub.f32 %v128, %v152
        %v155 = vmul.f32 %v154, %v154
        %v157 = vrot.slane %v144, 4
        %v159 = vmul.f32 %v155, %v157
        %v160 = vmul.f32 %v159, %v150
        %v161 = vsub.f32 0.0, %v154
        %v163 = vrot.slane %v146, 4
        %v165 = vmul.f32 %v161, %v163
        %v166 = vmax.f32 %v165, 0.0
        %v167 = vand.u32 2147483647, %v165
        %v168 = vsub.f32 0.0, %v167
        %v169 = vmul.f32 %v168, 1.442695
        %v170 = vpow.pop %v169
        %v171 = vadd.f32 %v170, 1.0
        %v172 = vlog2.pop %v171
        %v173 = vmul.f32 %v172, 0.6931472
        %v174 = vadd.f32 %v166, %v173
        %v175 = vsub.f32 1.0, %v144
        %v177 = vrot.slane %v175, 4
        %v179 = vmul.f32 %v174, %v177
        %v180 = vmul.f32 %v179, %v150
        %v181 = vld [vmem:[#allocation2] sm:$0x1]
        %v182 = vadd.f32 %v160, %v180
        %vm183 = vcmask 1041408
        %v184 = vsel %vm183, %v182, 0.0
        %185 = vadd.xlane.f32.xlu0 %v184
        %v186 = vpop.xlane.xlu0 %185
        %v187 = vrot.slane %v186, 4
        %v188 = vadd.f32 %v186, %v187
        %v189 = vrot.slane %v188, 2
        %v190 = vadd.f32 %v188, %v189
        %v191 = vrot.slane %v190, 1
        %v192 = vadd.f32 %v190, %v191
        %s193 = vtos %v192
        %v194 = vstv %s193
        %v195 = vadd.f32 %v181, %v194
        %vm196 = vcmask 0
        %197 = vst.msk [vmem:[#allocation2] sm:$0x1] %vm196, %v195
        %p198 = scmp.eq.s32.totalorder %s16, 1
        // Predicated region
        $region33: #{tpu_custom_call.1} parent=23 // pred_check
          %p199 = pneg %p198
        $region34: #{tpu_custom_call.1} parent=23 // pred_check_branch
          %201 = sbr.rel (%p199) target = $region36
        $region35: #{tpu_custom_call.1} parent=23 // pred_region
          %v202 = vld [vmem:[#allocation2] sm:$0x1]
          %v203 = vrcp.pop 512.0
          %v204 = vmul.f32 %v202, %v203
          %205 = vst.msk [vmem:[#allocation6] sm:$0x1] %vm196, %v204
        $region36: #{tpu_custom_call.1} parent=23 // pred_fallthru
          _
        // Predicated region
        $region37: #{tpu_custom_call.1} parent=23 // pred_check
          %p206 = pneg %p55
        $region38: #{tpu_custom_call.1} parent=23 // pred_check_branch
          %208 = sbr.rel (%p206) target = $region40
        $region39: #{tpu_custom_call.1} parent=23 // pred_region
          %s210 = ssub.s32 16, 16
          %211 = vsyncadd [#allocation5], %s210
          %s213 = sshll.u32 [#allocation6], 4
          %s214 = int_to_ptr.vmem [resolvable:$true] %s213
          %216 = dma.vmem_to_hbm [thread:$0]  %s214, 16, %s1, [#allocation5]
        $region40: #{tpu_custom_call.1} parent=23 // pred_fallthru
          _
        // Predicated region
        $region41: #{tpu_custom_call.1} parent=23 // pred_check
          %p217 = pneg %p55
        $region42: #{tpu_custom_call.1} parent=23 // pred_check_branch
          %219 = sbr.rel (%p217) target = $region44
        $region43: #{tpu_custom_call.1} parent=23 // pred_region
          %220 = dma.done [#allocation5], 16
        $region44: #{tpu_custom_call.1} parent=23 // pred_fallthru
          _
      $region24: #{tpu_custom_call.1} parent=5 // pred_fallthru
        _
      %p221 = scmp.le.s32.totalorder 2, %s11
      // Predicated region
      $region45: #{tpu_custom_call.1} parent=5 // pred_check
        %p222 = pneg %p221
      $region46: #{tpu_custom_call.1} parent=5 // pred_check_branch
        %224 = sbr.rel (%p222) target = $region48
      $region47: #{tpu_custom_call.1} parent=5 // pred_region
        %s225 = ssub.s32 %s11, 2
      $region48: #{tpu_custom_call.1} parent=5 // pred_fallthru
        _
    $region6: #{tpu_custom_call.1} parent=1 // loop_footer
      %s15 = sadd.s32 1, %s11
    $region7: #{tpu_custom_call.1} parent=1 // loop_footer_branch
      %10 = sbr.rel target = $region3
    $region8: #{tpu_custom_call.1} parent=1 // loop_exit
      _
    %226 = vsyncpa [#allocation4], 1
    %s227 = scalar_lea.sflag [#allocation4], 1
    %228 = vsyncpa %s227, 1
    %229 = vsyncpa [#allocation5], 1
    %s230 = scalar_lea.sflag [#allocation5], 1
    %231 = vsyncpa %s230, 1

</llo_original>
